<compile_context>
chip_gen: v7x
topology: tpu7x:2x2x1
jax: 0.10.0
libtpu: 0.0.40
codegen_flags: <defaults>
</compile_context>

<pallas_src>
import functools
import math

import jax
import jax.numpy as jnp
from jax.experimental import pallas as pl
from jax.experimental.pallas import tpu as pltpu

COMPUTE_DTYPE = jnp.bfloat16          # MXU-native operand dtype
_VMEM_LIMIT = 48 * 1024 * 1024        # safe on v7x (64 MiB), small vs v5e/v6e


# ----------------------------------------------------------------------------
# Helpers
# ----------------------------------------------------------------------------
def _round_up(x, m):
    return ((x + m - 1) // m) * m


def _pick_tile(dim, tile_default, gran, min_blocks=1):
    """Pick a tile (multiple of `gran`) and the padded extent it implies."""
    dim_r = _round_up(max(int(dim), 1), gran)
    n = max(pl.cdiv(dim_r, tile_default), min_blocks)
    tile = _round_up(pl.cdiv(dim_r, n), gran)
    padded = tile * pl.cdiv(dim_r, tile)
    return tile, padded


def _maybe_pad2d(a, rows, cols):
    r, c = a.shape
    if (r, c) == (rows, cols):
        return a
    return jnp.pad(a, ((0, rows - r), (0, cols - c)))


def _itemsize(dt):
    return jnp.dtype(dt).itemsize


# ----------------------------------------------------------------------------
# Kernel 1: tiled matmul + bias (+ optional ReLU) — used for the pre-linears
# ----------------------------------------------------------------------------
def _mm_bias_kernel(x_ref, w_ref, b_ref, o_ref, acc_ref, *, activation):
    k = pl.program_id(2)

    @pl.when(k == 0)
    def _():
        acc_ref[...] = jnp.zeros_like(acc_ref)

    acc_ref[...] += jnp.dot(
        x_ref[...], w_ref[...], preferred_element_type=jnp.float32
    )

    @pl.when(k == pl.num_programs(2) - 1)
    def _():
        y = acc_ref[...] + b_ref[...]
        if activation == "relu":
            y = jnp.maximum(y, 0.0)
        o_ref[...] = y.astype(o_ref.dtype)


def matmul_bias(x, w, bias=None, activation="none", out_dtype=None,
                tm=512, tn=512, tk=1024):
    """y = x @ w + bias (optionally ReLU).  x: (M, K), w: (K, N) pre-transposed."""
    M, K = x.shape
    K2, N = w.shape
    assert K == K2, (x.shape, w.shape)
    out_dtype = out_dtype or x.dtype

    tm, Mp = _pick_tile(M, tm, 8, min_blocks=2)     # >=2 M blocks for v7x 2 TCs
    tn, Np = _pick_tile(N, tn, 128)
    tk, Kp = _pick_tile(K, tk, 128)

    x_p = _maybe_pad2d(x, Mp, Kp)
    w_p = _maybe_pad2d(w, Kp, Np)
    if bias is None:
        b_p = jnp.zeros((1, Np), jnp.float32)
    else:
        b_p = _maybe_pad2d(bias.reshape(1, -1).astype(jnp.float32), 1, Np)

    grid = (Mp // tm, Np // tn, Kp // tk)
    bytes_accessed = int(
        x_p.size * _itemsize(x_p.dtype) * (Np // tn)       # x re-read per N block
        + w_p.size * _itemsize(w_p.dtype) * (Mp // tm)     # w re-read per M block
        + Mp * Np * _itemsize(out_dtype)
    )

    out = pl.pallas_call(
        functools.partial(_mm_bias_kernel, activation=activation),
        out_shape=jax.ShapeDtypeStruct((Mp, Np), out_dtype),
        grid_spec=pltpu.PrefetchScalarGridSpec(
            num_scalar_prefetch=0,
            grid=grid,
            in_specs=[
                pl.BlockSpec((tm, tk), lambda i, j, k: (i, k)),
                pl.BlockSpec((tk, tn), lambda i, j, k: (k, j)),
                pl.BlockSpec((1, tn), lambda i, j, k: (0, j)),
            ],
            out_specs=pl.BlockSpec((tm, tn), lambda i, j, k: (i, j)),
            scratch_shapes=[pltpu.VMEM((tm, tn), jnp.float32)],
        ),
        compiler_params=pltpu.CompilerParams(
            dimension_semantics=("parallel", "parallel", "arbitrary"),
            vmem_limit_bytes=_VMEM_LIMIT,
        ),
        cost_estimate=pl.CostEstimate(
            flops=2 * Mp * Np * Kp, transcendentals=0,
            bytes_accessed=bytes_accessed),
    )(x_p, w_p, b_p)
    return out[:M, :N]


# ----------------------------------------------------------------------------
# Kernel 2: dual matmul — h_l = x @ Wl, h_r = x @ Wr from a single read of x
# ----------------------------------------------------------------------------
def _dual_mm_kernel(x_ref, wl_ref, wr_ref, ol_ref, or_ref, accl_ref, accr_ref):
    k = pl.program_id(2)

    @pl.when(k == 0)
    def _():
        accl_ref[...] = jnp.zeros_like(accl_ref)
        accr_ref[...] = jnp.zeros_like(accr_ref)

    x = x_ref[...]
    accl_ref[...] += jnp.dot(x, wl_ref[...], preferred_element_type=jnp.float32)
    accr_ref[...] += jnp.dot(x, wr_ref[...], preferred_element_type=jnp.float32)

    @pl.when(k == pl.num_programs(2) - 1)
    def _():
        ol_ref[...] = accl_ref[...].astype(ol_ref.dtype)
        or_ref[...] = accr_ref[...].astype(or_ref.dtype)


def dual_matmul(x, wl, wr, out_dtype=None, tm=512, tn=512, tk=1024):
    M, K = x.shape
    K2, N = wl.shape
    assert K == K2 and wr.shape == (K, N)
    out_dtype = out_dtype or x.dtype

    tm, Mp = _pick_tile(M, tm, 8, min_blocks=2)
    tn, Np = _pick_tile(N, tn, 128)
    tk, Kp = _pick_tile(K, tk, 128)

    x_p = _maybe_pad2d(x, Mp, Kp)
    wl_p = _maybe_pad2d(wl, Kp, Np)
    wr_p = _maybe_pad2d(wr, Kp, Np)

    grid = (Mp // tm, Np // tn, Kp // tk)
    bytes_accessed = int(
        x_p.size * _itemsize(x_p.dtype) * (Np // tn)
        + 2 * wl_p.size * _itemsize(wl_p.dtype) * (Mp // tm)
        + 2 * Mp * Np * _itemsize(out_dtype)
    )

    hl, hr = pl.pallas_call(
        _dual_mm_kernel,
        out_shape=(jax.ShapeDtypeStruct((Mp, Np), out_dtype),
                   jax.ShapeDtypeStruct((Mp, Np), out_dtype)),
        grid_spec=pltpu.PrefetchScalarGridSpec(
            num_scalar_prefetch=0,
            grid=grid,
            in_specs=[
                pl.BlockSpec((tm, tk), lambda i, j, k: (i, k)),
                pl.BlockSpec((tk, tn), lambda i, j, k: (k, j)),
                pl.BlockSpec((tk, tn), lambda i, j, k: (k, j)),
            ],
            out_specs=[pl.BlockSpec((tm, tn), lambda i, j, k: (i, j)),
                       pl.BlockSpec((tm, tn), lambda i, j, k: (i, j))],
            scratch_shapes=[pltpu.VMEM((tm, tn), jnp.float32),
                            pltpu.VMEM((tm, tn), jnp.float32)],
        ),
        compiler_params=pltpu.CompilerParams(
            dimension_semantics=("parallel", "parallel", "arbitrary"),
            vmem_limit_bytes=_VMEM_LIMIT,
        ),
        cost_estimate=pl.CostEstimate(
            flops=4 * Mp * Np * Kp, transcendentals=0,
            bytes_accessed=bytes_accessed),
    )(x_p, wl_p, wr_p)
    return hl[:M, :N], hr[:M, :N]


# ----------------------------------------------------------------------------
# Kernel 3: aggregation + combine — out = A @ h_l + h_r + b (+ReLU / +L2 norm)
# ----------------------------------------------------------------------------
def _agg_combine_kernel(a_ref, hl_ref, hr_ref, b_ref, o_ref, acc_ref, *,
                        activation, l2norm, eps):
    k = pl.program_id(2)

    @pl.when(k == 0)
    def _():
        acc_ref[...] = jnp.zeros_like(acc_ref)

    acc_ref[...] += jnp.dot(
        a_ref[...], hl_ref[...], preferred_element_type=jnp.float32
    )

    @pl.when(k == pl.num_programs(2) - 1)
    def _():
        y = acc_ref[...] + hr_ref[...].astype(jnp.float32) + b_ref[...]
        if activation == "relu":
            y = jnp.maximum(y, 0.0)
        if l2norm:
            # F.normalize(p=2, dim=-1): padded lanes are zero so the row
            # sum-of-squares over the full tn block equals the true norm.
            ss = jnp.sum(y * y, axis=-1, keepdims=True)
            y = y * jax.lax.rsqrt(jnp.maximum(ss, eps * eps))
        o_ref[...] = y.astype(o_ref.dtype)


def sage_aggregate(adj, h_l, h_r, bias, activation="none", l2norm=False,
                   out_dtype=None, tm=512, tn=512, tk=1024, eps=1e-12):
    M, K = adj.shape
    K2, N = h_l.shape
    assert K == K2 and h_r.shape == (M, N), (adj.shape, h_l.shape, h_r.shape)
    out_dtype = out_dtype or h_l.dtype

    tm, Mp = _pick_tile(M, tm, 8, min_blocks=2)
    tn, Np = _pick_tile(N, tn, 128)
    tk, Kp = _pick_tile(K, tk, 128)
    fuse_norm = bool(l2norm) and (Np == tn)   # full row fits one N block

    a_p = _maybe_pad2d(adj, Mp, Kp)
    hl_p = _maybe_pad2d(h_l, Kp, Np)
    hr_p = _maybe_pad2d(h_r, Mp, Np)
    b_p = _maybe_pad2d(bias.reshape(1, -1).astype(jnp.float32), 1, Np)

    grid = (Mp // tm, Np // tn, Kp // tk)
    bytes_accessed = int(
        a_p.size * _itemsize(a_p.dtype) * (Np // tn)
        + hl_p.size * _itemsize(hl_p.dtype) * (Mp // tm)
        + hr_p.size * _itemsize(hr_p.dtype)
        + b_p.size * 4
        + Mp * Np * _itemsize(out_dtype)
    )

    out = pl.pallas_call(
        functools.partial(_agg_combine_kernel, activation=activation,
                          l2norm=fuse_norm, eps=eps),
        out_shape=jax.ShapeDtypeStruct((Mp, Np), out_dtype),
        grid_spec=pltpu.PrefetchScalarGridSpec(
            num_scalar_prefetch=0,
            grid=grid,
            in_specs=[
                pl.BlockSpec((tm, tk), lambda i, j, k: (i, k)),   # A_norm
                pl.BlockSpec((tk, tn), lambda i, j, k: (k, j)),   # h_l
                pl.BlockSpec((tm, tn), lambda i, j, k: (i, j)),   # h_r (root)
                pl.BlockSpec((1, tn), lambda i, j, k: (0, j)),    # bias
            ],
            out_specs=pl.BlockSpec((tm, tn), lambda i, j, k: (i, j)),
            scratch_shapes=[pltpu.VMEM((tm, tn), jnp.float32)],
        ),
        compiler_params=pltpu.CompilerParams(
            dimension_semantics=("parallel", "parallel", "arbitrary"),
            vmem_limit_bytes=_VMEM_LIMIT,
        ),
        cost_estimate=pl.CostEstimate(
            flops=2 * Mp * Np * Kp,
            transcendentals=Mp if fuse_norm else 0,
            bytes_accessed=bytes_accessed),
    )(a_p, hl_p, hr_p, b_p)

    out = out[:M, :N]
    if l2norm and not fuse_norm:
        out = l2_normalize(out, eps=eps)     # fallback when N spans >1 block
    return out


# ----------------------------------------------------------------------------
# Standalone row-wise L2 normalize (fallback only)
# ----------------------------------------------------------------------------
def _l2norm_kernel(x_ref, o_ref, *, eps):
    x = x_ref[...].astype(jnp.float32)
    ss = jnp.sum(x * x, axis=-1, keepdims=True)
    o_ref[...] = (x * jax.lax.rsqrt(jnp.maximum(ss, eps * eps))).astype(o_ref.dtype)


def l2_normalize(x, eps=1e-12, tm=512):
    M, N = x.shape
    tm, Mp = _pick_tile(M, tm, 8, min_blocks=2)
    Np = _round_up(N, 128)
    x_p = _maybe_pad2d(x, Mp, Np)
    out = pl.pallas_call(
        functools.partial(_l2norm_kernel, eps=eps),
        out_shape=jax.ShapeDtypeStruct((Mp, Np), x.dtype),
        grid_spec=pltpu.PrefetchScalarGridSpec(
            num_scalar_prefetch=0,
            grid=(Mp // tm,),
            in_specs=[pl.BlockSpec((tm, Np), lambda i: (i, 0))],
            out_specs=pl.BlockSpec((tm, Np), lambda i: (i, 0)),
        ),
        compiler_params=pltpu.CompilerParams(
            dimension_semantics=("parallel",),
            vmem_limit_bytes=_VMEM_LIMIT,
        ),
    )(x_p)
    return out[:M, :N]


# ----------------------------------------------------------------------------
# Model: params (pre-padded, bf16 weights), graph preprocessing, forward
# ----------------------------------------------------------------------------
def _init_linear(key, d_in, d_out, dtype=COMPUTE_DTYPE):
    """nn.Linear-style init; weight stored pre-transposed, padded, bf16."""
    kw, kb = jax.random.split(key)
    bound = 1.0 / math.sqrt(d_in)
    w = jax.random.uniform(kw, (d_in, d_out), jnp.float32, -bound, bound)
    b = jax.random.uniform(kb, (d_out,), jnp.float32, -bound, bound)
    kp, npad = _round_up(d_in, 128), _round_up(d_out, 128)
    w_p = jnp.pad(w, ((0, kp - d_in), (0, npad - d_out))).astype(dtype)
    b_p = jnp.pad(b, (0, npad - d_out)).astype(jnp.float32).reshape(1, npad)
    return w_p, b_p


def _init_sage_conv(key, d_in, d_out):
    """PyG SAGEConv: lin_l (bias) on aggregated neighbors, lin_r (no bias) on root."""
    kl, kr = jax.random.split(key)
    wl, b = _init_linear(kl, d_in, d_out)
    wr, _ = _init_linear(kr, d_in, d_out)
    return {"wl": wl, "wr": wr, "b": b}


def init_sage_params(key, input_dim, feature_dim, hidden_dim, output_dim,
                     layer_num=2, feature_pre=True):
    n_hidden = max(layer_num - 2, 0)
    keys = jax.random.split(key, 4 + n_hidden)
    params = {"feature_pre": feature_pre, "layer_num": layer_num}
    if feature_pre:
        params["pre_w"], params["pre_b"] = _init_linear(keys[0], input_dim, feature_dim)
        params["pre2_w"], params["pre2_b"] = _init_linear(keys[1], feature_dim, hidden_dim)
        params["conv_first"] = _init_sage_conv(keys[2], hidden_dim, hidden_dim)
    else:
        params["conv_first"] = _init_sage_conv(keys[2], input_dim, hidden_dim)
    params["conv_hidden"] = [
        _init_sage_conv(keys[3 + i], hidden_dim, hidden_dim) for i in range(n_hidden)
    ]
    params["conv_out"] = _init_sage_conv(keys[3 + n_hidden], hidden_dim, output_dim)
    return params


def build_mean_adj(edge_index, num_nodes):
    """Dense row-normalized adjacency: A[i, j] = 1/deg_in(i) for edge j -> i.
    mean-aggregation(x) == A @ x (0 for isolated nodes, matching PyG scatter-mean)."""
    # TODO(synk): for large graphs replace the dense N x N aggregation with a
    # sparse CSR gather kernel (scalar-prefetch row offsets + make_async_copy).
    src, dst = edge_index[0], edge_index[1]
    adj = jnp.zeros((num_nodes, num_nodes), jnp.float32).at[dst, src].add(1.0)
    deg = jnp.sum(adj, axis=1, keepdims=True)
    return adj / jnp.maximum(deg, 1.0)


def prepare_inputs(x, edge_index, num_nodes, dtype=COMPUTE_DTYPE):
    """Pad the node dim to a multiple of 128 once and cast to bf16 so every
    downstream pallas_call sees lane-aligned operands with zero pad churn."""
    mp = _round_up(num_nodes, 128)
    kp = _round_up(x.shape[1], 128)
    adj = build_mean_adj(edge_index, num_nodes)
    adj_p = jnp.pad(adj, ((0, mp - num_nodes), (0, mp - num_nodes))).astype(dtype)
    x_p = jnp.pad(x, ((0, mp - num_nodes), (0, kp - x.shape[1]))).astype(dtype)
    return x_p, adj_p


def sage_conv_forward(x, adj, lp, activation="none", l2norm=False, out_dtype=None):
    # y = A @ (x @ Wl) + x @ Wr + b   (== lin_l(mean_j x_j) + lin_r(x_i))
    h_l, h_r = dual_matmul(x, lp["wl"], lp["wr"])
    return sage_aggregate(adj, h_l, h_r, lp["b"], activation=activation,
                          l2norm=l2norm, out_dtype=out_dtype)


def sage_forward(params, x_p, adj_p):
    """Inference-mode forward. Inputs are the pre-padded bf16 arrays from
    prepare_inputs; output stays padded (slice [:num_nodes, :output_dim])."""
    x = x_p
    if params["feature_pre"]:
        x = matmul_bias(x, params["pre_w"], params["pre_b"])
        x = matmul_bias(x, params["pre2_w"], params["pre2_b"])
    x = sage_conv_forward(x, adj_p, params["conv_first"], activation="relu")
    # TODO(synk): F.dropout is identity in eval mode; training-mode dropout
    # could use pltpu.prng_seed + pltpu.stateful_bernoulli in the finalize.
    for lp in params["conv_hidden"]:
        x = sage_conv_forward(x, adj_p, lp, activation="relu")
    # conv_out with the L2 normalize fused into the matmul finalize branch.
    x = sage_conv_forward(x, adj_p, params["conv_out"], activation="none",
                          l2norm=True, out_dtype=jnp.float32)
    return x


# ----------------------------------------------------------------------------
# Pure-JAX reference (HIGHEST precision, same bf16-stored weights)
# ----------------------------------------------------------------------------
def sage_forward_ref(params, x_p, adj_p, num_nodes, output_dim):
    f32 = jnp.float32
    mm = lambda a, b: jnp.dot(a, b, precision=jax.lax.Precision.HIGHEST)
    x = x_p.astype(f32)
    adj = adj_p.astype(f32)
    if params["feature_pre"]:
        x = mm(x, params["pre_w"].astype(f32)) + params["pre_b"]
        x = mm(x, params["pre2_w"].astype(f32)) + params["pre2_b"]

    def conv(x, lp, relu):
        y = mm(mm(adj, x), lp["wl"].astype(f32)) + mm(x, lp["wr"].astype(f32)) + lp["b"]
        return jnp.maximum(y, 0.0) if relu else y

    x = conv(x, params["conv_first"], True)
    for lp in params["conv_hidden"]:
        x = conv(x, lp, True)
    x = conv(x, params["conv_out"], False)
    norm = jnp.sqrt(jnp.sum(x * x, axis=-1, keepdims=True))
    x = x / jnp.maximum(norm, 1e-12)
    return x[:num_nodes, :output_dim]


# ----------------------------------------------------------------------------
if __name__ == "__main__":
    key = jax.random.PRNGKey(0)
    k_x, k_e1, k_e2, k_p = jax.random.split(key, 4)

    # Small deterministic graph
    num_nodes, num_edges = 32, 128
    input_dim, feature_dim, hidden_dim, output_dim = 32, 64, 32, 16
    layer_num = 3  # -> one hidden SAGEConv layer

    x = jax.random.normal(k_x, (num_nodes, input_dim), dtype=jnp.float32)
    edge_index = jnp.stack([
        jax.random.randint(k_e1, (num_edges,), 0, num_nodes),
        jax.random.randint(k_e2, (num_edges,), 0, num_nodes),
    ])

    params = init_sage_params(
        k_p, input_dim, feature_dim, hidden_dim, output_dim,
        layer_num=layer_num, feature_pre=True,
    )
    x_p, adj_p = prepare_inputs(x, edge_index, num_nodes)

    out_padded = sage_forward(params, x_p, adj_p)
    out_padded = jax.block_until_ready(out_padded)
    out = out_padded[:num_nodes, :output_dim]

    ref = sage_forward_ref(params, x_p, adj_p, num_nodes, output_dim)
    assert out.shape == (num_nodes, output_dim), out.shape
    max_err = float(jnp.max(jnp.abs(out - ref)))
    assert jnp.allclose(out, ref, atol=5e-2, rtol=5e-2), max_err
    # Rows should be unit-norm after F.normalize (computed in f32)
    assert jnp.allclose(jnp.linalg.norm(out, axis=-1), 1.0, atol=5e-3)

    print("KERNEL_OK")
</pallas_src>

<mosaic_0001>
module attributes {stable_mosaic.version = 11 : i64} {
  func.func @_mm_bias_kernel(%arg0: i32, %arg1: i32, %arg2: i32, %arg3: memref<64x128xbf16, #tpu.memory_space<vmem>>, %arg4: memref<128x128xbf16, #tpu.memory_space<vmem>>, %arg5: memref<1x128xf32, #tpu.memory_space<vmem>>, %arg6: memref<64x128xbf16, #tpu.memory_space<vmem>>, %arg7: memref<64x128xf32, #tpu.memory_space<vmem>>) attributes {dimension_semantics = [#tpu.dimension_semantics<parallel>, #tpu.dimension_semantics<parallel>, #tpu.dimension_semantics<arbitrary>], iteration_bounds = array<i64: 2, 1, 1>, scalar_prefetch = 0 : i64, scratch_operands = 1 : i64, tpu.core_type = #tpu.core_type<tc>, window_params = [{transform_indices = @transform_0, window_bounds = array<i64: 64, 128>}, {transform_indices = @transform_1, window_bounds = array<i64: 128, 128>}, {transform_indices = @transform_2, window_bounds = array<i64: 1, 128>}, {transform_indices = @transform_3, window_bounds = array<i64: 64, 128>}]} {
    %c0_i32 = arith.constant 0 : i32
    %0 = arith.cmpi eq, %arg2, %c0_i32 : i32
    %1 = arith.extui %0 : i1 to i32
    %c0_i32_0 = arith.constant 0 : i32
    %2 = arith.cmpi ne, %1, %c0_i32_0 : i32
    scf.if %2 {
      %cst_10 = arith.constant 0.000000e+00 : f32
      %12 = vector.broadcast %cst_10 : f32 to vector<64x128xf32>
      %c0_11 = arith.constant 0 : index
      %c0_12 = arith.constant 0 : index
      %13 = vector.load %arg7[%c0_11, %c0_12] : memref<64x128xf32, #tpu.memory_space<vmem>>, vector<64x128xf32>
      tpu.vector_store %arg7[%c0_11, %c0_12], %12 {strides = array<i32>} : memref<64x128xf32, #tpu.memory_space<vmem>>, vector<64x128xf32>,
    } else {
    }
    %c0 = arith.constant 0 : index
    %c0_1 = arith.constant 0 : index
    %3 = vector.load %arg7[%c0, %c0_1] : memref<64x128xf32, #tpu.memory_space<vmem>>, vector<64x128xf32>
    %c0_2 = arith.constant 0 : index
    %c0_3 = arith.constant 0 : index
    %4 = vector.load %arg3[%c0_2, %c0_3] : memref<64x128xbf16, #tpu.memory_space<vmem>>, vector<64x128xbf16>
    %c0_4 = arith.constant 0 : index
    %c0_5 = arith.constant 0 : index
    %5 = vector.load %arg4[%c0_4, %c0_5] : memref<128x128xbf16, #tpu.memory_space<vmem>>, vector<128x128xbf16>
    %cst = arith.constant dense<0.000000e+00> : vector<64x128xf32>
    %6 = tpu.matmul %4, %5, %cst {dimension_numbers = #tpu.dot_dimension_numbers<[1], [0], [0], [1], [0, 0, 1, 1], [], []>} : vector<64x128xbf16>, vector<128x128xbf16>, vector<64x128xf32> -> vector<64x128xf32>
    %7 = arith.addf %3, %6 : vector<64x128xf32>
    %c0_6 = arith.constant 0 : index
    %c0_7 = arith.constant 0 : index
    %8 = vector.load %arg7[%c0_6, %c0_7] : memref<64x128xf32, #tpu.memory_space<vmem>>, vector<64x128xf32>
    tpu.vector_store %arg7[%c0_6, %c0_7], %7 {strides = array<i32>} : memref<64x128xf32, #tpu.memory_space<vmem>>, vector<64x128xf32>,
    %c0_i32_8 = arith.constant 0 : i32
    %9 = arith.cmpi eq, %arg2, %c0_i32_8 : i32
    %10 = arith.extui %9 : i1 to i32
    %c0_i32_9 = arith.constant 0 : i32
    %11 = arith.cmpi ne, %10, %c0_i32_9 : i32
    scf.if %11 {
      %c0_10 = arith.constant 0 : index
      %c0_11 = arith.constant 0 : index
      %12 = vector.load %arg7[%c0_10, %c0_11] : memref<64x128xf32, #tpu.memory_space<vmem>>, vector<64x128xf32>
      %c0_12 = arith.constant 0 : index
      %c0_13 = arith.constant 0 : index
      %13 = vector.load %arg5[%c0_12, %c0_13] : memref<1x128xf32, #tpu.memory_space<vmem>>, vector<1x128xf32>
      %14 = vector.broadcast %13 : vector<1x128xf32> to vector<64x128xf32>
      %15 = arith.addf %12, %14 : vector<64x128xf32>
      %16 = arith.truncf %15 : vector<64x128xf32> to vector<64x128xbf16>
      %c0_14 = arith.constant 0 : index
      %c0_15 = arith.constant 0 : index
      %17 = vector.load %arg6[%c0_14, %c0_15] : memref<64x128xbf16, #tpu.memory_space<vmem>>, vector<64x128xbf16>
      tpu.vector_store %arg6[%c0_14, %c0_15], %16 {strides = array<i32>} : memref<64x128xbf16, #tpu.memory_space<vmem>>, vector<64x128xbf16>,
    } else {
    }
    return
  }
  func.func @transform_0(%arg0: i32, %arg1: i32, %arg2: i32) -> (i32, i32) {
    %c0_i32 = arith.constant 0 : i32
    return %arg0, %arg2 : i32, i32
  }
  func.func @transform_1(%arg0: i32, %arg1: i32, %arg2: i32) -> (i32, i32) {
    %c0_i32 = arith.constant 0 : i32
    return %arg2, %arg1 : i32, i32
  }
  func.func @transform_2(%arg0: i32, %arg1: i32, %arg2: i32) -> (i32, i32) {
    %c0_i32 = arith.constant 0 : i32
    %c0_i32_0 = arith.constant 0 : i32
    return %c0_i32, %arg1 : i32, i32
  }
  func.func @transform_3(%arg0: i32, %arg1: i32, %arg2: i32) -> (i32, i32) {
    %c0_i32 = arith.constant 0 : i32
    return %arg0, %arg1 : i32, i32
  }
}

</mosaic_0001>

<llo_original>
// kernel: tpu_custom_call.1
$region0: #{tpu_custom_call.1}
  #allocation0 [shape = 'u32[]', space=smem, size = 0x4, offset = 0x4, fixed_abs, tag = 'smem constant byte address 0x4 - core index']
  #allocation1 [shape = 'u32[144,128]{1,0:T(1,128)}', space=vmem, size = 0x12000, scoped, tag = 'internal scratch']
  #allocation2 [shape = 'f32[64,128]{1,0:T(8,128)}', space=vmem, size = 0x8000, scoped, tag = 'scratch operand']
  %s0 = inlined_call_operand.hbm [shape: bf16[128,128], index: 0, kind: input, shape index: {}]
  %s1 = inlined_call_operand.hbm [shape: bf16[128,128], index: 1, kind: input, shape index: {}]
  %s2 = inlined_call_operand.vmem [shape: f32[1,128], index: 2, kind: input, shape index: {}]
  %s3 = inlined_call_operand.hbm [shape: bf16[128,128], index: 3, kind: output, shape index: {}]
  %s4 = sld [smem:[#allocation0]]
  $region61: #{tpu_custom_call.1} parent=0
    _
  %s6 = ssub.s32 1, %s4
  %s7 = scalar_select 0, %s6, %s4
  $region1: #{tpu_custom_call.1} parent=0
    #allocation3 [shape = 'u8[32768]{0}', space=vmem, size = 0x8000, scoped, tag = 'input window, operand 0']
    #allocation4 [shape = 's32[2]{0}', space=sflag, size = 0x8, scoped, tag = 'scoped memory for tpu_custom_call.1']
    #allocation5 [shape = 's32[2]{0}', space=sflag, size = 0x8, scoped, tag = 'scoped memory for tpu_custom_call.1']
    #allocation6 [shape = 'u8[32768]{0}', space=vmem, size = 0x8000, scoped, tag = 'input window, operand 1, single buffered']
    #allocation7 [shape = 's32[1]{0}', space=sflag, size = 0x4, scoped, tag = 'scoped memory for tpu_custom_call.1']
    #allocation8 [shape = 'u8[32768]{0}', space=vmem, size = 0x8000, scoped, tag = 'output window, operand 0']
    %8 = vsyncpa [#allocation4], 0
    %s9 = scalar_lea.sflag [#allocation4], 1
    %10 = vsyncpa %s9, 0
    %11 = vsyncpa [#allocation7], 0
    %12 = vsyncpa [#allocation5], 0
    %s13 = scalar_lea.sflag [#allocation5], 1
    %14 = vsyncpa %s13, 0
    loop: start=0, step=1, limit=4
    $region2: #{tpu_custom_call.1} parent=1 // loop_pre_header
      _
    $region3: #{tpu_custom_call.1} parent=1 // loop_header
      %s16 = sphi 0, %s20
      %p17 = scmp.ge.s32.totalorder %s16, 4
      %s23 = sphi 0, %s42
      %s24 = sphi 0, %s38
      %s25 = sphi 0, %s34
      %s26 = sphi 0, %s23
      %s27 = sphi 0, %s24
      %s28 = sphi 0, %s25
      %s29 = sphi 0, %s26
      %s30 = sphi 0, %s27
      %s31 = sphi 0, %s28
      %s47 = sphi 0, %s49
      %s50 = sphi 0, %s47
      %s51 = sphi 0, %s50
      %s67 = sphi 0, %s51
      %s75 = sphi 0, %s77
      %s78 = sphi 0, %s75
      %s79 = sphi 0, %s78
      %s95 = sphi 0, %s79
      %s101 = sphi 0, %s103
      %s104 = sphi 0, %s101
      %s105 = sphi 0, %s104
      %s121 = sphi 0, %s105
      %s129 = sphi 0, %s131
      %s132 = sphi 0, %s129
      %s133 = sphi 0, %s132
      %s149 = sphi 0, %s133
    $region4: #{tpu_custom_call.1} parent=1 // loop_header_branch
      %19 = sbr.rel (%p17) target = $region8
    $region5: #{tpu_custom_call.1} parent=1 // loop_body
      %s21 = ssub.s32 %s16, 1
      %s22 = ssub.s32 %s16, 2
      %s32 = sadd.s32 1, %s25
      %p33 = scmp.ge.s32.totalorder %s32, 1
      %s34 = scalar_select %p33, 0, %s32
      %s35 = sadd.s32 1, %s24
      %s36 = scalar_select %p33, %s35, %s24
      %p37 = scmp.ge.s32.totalorder %s36, 1
      %s38 = scalar_select %p37, 0, %s36
      %s39 = sadd.s32 1, %s23
      %s40 = scalar_select %p37, %s39, %s23
      %p41 = scmp.ge.s32.totalorder %s40, 2
      %s42 = scalar_select %p41, 0, %s40
      %s43 = ssub.s32 %s23, %s42
      %s44 = ssub.s32 %s25, %s34
      %s45 = sor.u32 %s43, %s44
      %p46 = scmp.eq.s32.totalorder %s45, 0
      %s48 = sadd.s32 %s47, 1
      %s49 = scalar_select %p46, %s47, %s48
      %p52 = pneg %p46
      %p53 = scmp.eq.s32.totalorder %s16, 1
      %p54 = por %p52, %p53
      %p55 = scmp.ne.s32.totalorder %s47, %s50
      %p56 = scmp.eq.s32.totalorder %s16, 0
      %p57 = por %p55, %p56
      %p58 = scmp.ne.s32.totalorder %s47, %s50
      %p59 = scmp.eq.s32.totalorder %s21, 1
      %p60 = por %p58, %p59
      %p61 = scmp.ne.s32.totalorder %s50, %s51
      %p62 = scmp.eq.s32.totalorder %s21, 0
      %p63 = por %p61, %p62
      %p64 = scmp.ne.s32.totalorder %s50, %s51
      %p65 = scmp.eq.s32.totalorder %s22, 1
      %p66 = por %p64, %p65
      %p68 = scmp.ne.s32.totalorder %s51, %s67
      %p69 = scmp.eq.s32.totalorder %s22, 0
      %p70 = por %p68, %p69
      %s71 = ssub.s32 %s25, %s34
      %s72 = ssub.s32 %s24, %s38
      %s73 = sor.u32 %s71, %s72
      %p74 = scmp.eq.s32.totalorder %s73, 0
      %s76 = sadd.s32 %s75, 1
      %s77 = scalar_select %p74, %s75, %s76
      %p80 = pneg %p74
      %p81 = scmp.eq.s32.totalorder %s16, 1
      %p82 = por %p80, %p81
      %p83 = scmp.ne.s32.totalorder %s75, %s78
      %p84 = scmp.eq.s32.totalorder %s16, 0
      %p85 = por %p83, %p84
      %p86 = scmp.ne.s32.totalorder %s75, %s78
      %p87 = scmp.eq.s32.totalorder %s21, 1
      %p88 = por %p86, %p87
      %p89 = scmp.ne.s32.totalorder %s78, %s79
      %p90 = scmp.eq.s32.totalorder %s21, 0
      %p91 = por %p89, %p90
      %p92 = scmp.ne.s32.totalorder %s78, %s79
      %p93 = scmp.eq.s32.totalorder %s22, 1
      %p94 = por %p92, %p93
      %p96 = scmp.ne.s32.totalorder %s79, %s95
      %p97 = scmp.eq.s32.totalorder %s22, 0
      %p98 = por %p96, %p97
      %s99 = ssub.s32 %s24, %s38
      %p100 = scmp.eq.s32.totalorder %s99, 0
      %s102 = sadd.s32 %s101, 1
      %s103 = scalar_select %p100, %s101, %s102
      %p106 = pneg %p100
      %p107 = scmp.eq.s32.totalorder %s16, 1
      %p108 = por %p106, %p107
      %p109 = scmp.ne.s32.totalorder %s101, %s104
      %p110 = scmp.eq.s32.totalorder %s16, 0
      %p111 = por %p109, %p110
      %p112 = scmp.ne.s32.totalorder %s101, %s104
      %p113 = scmp.eq.s32.totalorder %s21, 1
      %p114 = por %p112, %p113
      %p115 = scmp.ne.s32.totalorder %s104, %s105
      %p116 = scmp.eq.s32.totalorder %s21, 0
      %p117 = por %p115, %p116
      %p118 = scmp.ne.s32.totalorder %s104, %s105
      %p119 = scmp.eq.s32.totalorder %s22, 1
      %p120 = por %p118, %p119
      %p122 = scmp.ne.s32.totalorder %s105, %s121
      %p123 = scmp.eq.s32.totalorder %s22, 0
      %p124 = por %p122, %p123
      %s125 = ssub.s32 %s23, %s42
      %s126 = ssub.s32 %s24, %s38
      %s127 = sor.u32 %s125, %s126
      %p128 = scmp.eq.s32.totalorder %s127, 0
      %s130 = sadd.s32 %s129, 1
      %s131 = scalar_select %p128, %s129, %s130
      %p134 = pneg %p128
      %p135 = scmp.eq.s32.totalorder %s16, 1
      %p136 = por %p134, %p135
      %p137 = scmp.ne.s32.totalorder %s129, %s132
      %p138 = scmp.eq.s32.totalorder %s16, 0
      %p139 = por %p137, %p138
      %p140 = scmp.ne.s32.totalorder %s129, %s132
      %p141 = scmp.eq.s32.totalorder %s21, 1
      %p142 = por %p140, %p141
      %p143 = scmp.ne.s32.totalorder %s132, %s133
      %p144 = scmp.eq.s32.totalorder %s21, 0
      %p145 = por %p143, %p144
      %p146 = scmp.ne.s32.totalorder %s132, %s133
      %p147 = scmp.eq.s32.totalorder %s22, 1
      %p148 = por %p146, %p147
      %p150 = scmp.ne.s32.totalorder %s133, %s149
      %p151 = scmp.eq.s32.totalorder %s22, 0
      %p152 = por %p150, %p151
      %p153 = scmp.le.s32.totalorder 1, %s16
      %p154 = scmp.lt.s32.totalorder %s16, 3
      %p155 = pnand %p153, %p154
      %p156 = pneg %p155
      // Predicated region
      $region9: #{tpu_custom_call.1} parent=5 // pred_check
        _
      $region10: #{tpu_custom_call.1} parent=5 // pred_check_branch
        %158 = sbr.rel (%p155) target = $region12
      $region11: #{tpu_custom_call.1} parent=5 // pred_region
        %s159 = ssub.s32 %s16, 1
        // Predicated region
        $region13: #{tpu_custom_call.1} parent=11 // pred_check
          %p160 = pneg %p91
        $region14: #{tpu_custom_call.1} parent=11 // pred_check_branch
          %162 = sbr.rel (%p160) target = $region16
        $region15: #{tpu_custom_call.1} parent=11 // pred_region
          %s163 = smul.u32 16, %s28
          %s165 = ssub.s32 1024, 1024
          %166 = vsyncadd [#allocation7], %s165
          %s167 = sadd.s32 %s27, %s163
          %s168 = smul.addr %s167, 64
          %s169 = scalar_lea.hbm %s1, %s168
          %s170 = sshll.u32 [#allocation6], 4
          %s171 = int_to_ptr.vmem [resolvable:$true] %s170
          %176 = dma.hbm_to_vmem [thread:$0]  %s169, 1024, %s171, [#allocation7], 64, 64, 4
        $region16: #{tpu_custom_call.1} parent=11 // pred_fallthru
          _
        // Predicated region
        $region17: #{tpu_custom_call.1} parent=11 // pred_check
          %p177 = pneg %p117
        $region18: #{tpu_custom_call.1} parent=11 // pred_check_branch
          %179 = sbr.rel (%p177) target = $region20
        $region19: #{tpu_custom_call.1} parent=11 // pred_region
          %p180 = scmp.lt.s32.totalorder %s27, 0
          %s181 = scalar_select %p180, %s27, 0
          %s182 = scalar_lea.vmem %s2, %s181
        $region20: #{tpu_custom_call.1} parent=11 // pred_fallthru
          _
      $region12: #{tpu_custom_call.1} parent=5 // pred_fallthru
        _
      %p183 = scmp.lt.s32.totalorder %s16, 2
      // Predicated region
      $region21: #{tpu_custom_call.1} parent=5 // pred_check
        %p184 = pneg %p183
      $region22: #{tpu_custom_call.1} parent=5 // pred_check_branch
        %186 = sbr.rel (%p184) target = $region24
      $region23: #{tpu_custom_call.1} parent=5 // pred_region
        // Predicated region
        $region25: #{tpu_custom_call.1} parent=23 // pred_check
          %p187 = pneg %p57
        $region26: #{tpu_custom_call.1} parent=23 // pred_check_branch
          %189 = sbr.rel (%p187) target = $region28
        $region27: #{tpu_custom_call.1} parent=23 // pred_region
          %s190 = sand.u32 %s47, 1
          %s191 = scalar_lea.sflag [#allocation4], %s190
          %s192 = sand.u32 %s47, 1
          %s193 = smul.addr %s192, 32
          %s194 = scalar_lea.vmem [#allocation3], %s193
          %s195 = smul.u32 8, %s23
          %s197 = ssub.s32 512, 512
          %198 = vsyncadd %s191, %s197
          %s199 = sadd.s32 %s25, %s195
          %s200 = smul.addr %s199, 64
          %s201 = scalar_lea.hbm %s0, %s200
          %s202 = sshll.u32 %s194, 4
          %s203 = int_to_ptr.vmem [resolvable:$true] %s202
          %208 = dma.hbm_to_vmem [thread:$0]  %s201, 512, %s203, %s191, 64, 64, 4
        $region28: #{tpu_custom_call.1} parent=23 // pred_fallthru
          _
      $region24: #{tpu_custom_call.1} parent=5 // pred_fallthru
        _
      %p209 = scmp.le.s32.totalorder 1, %s16
      %p210 = scmp.lt.s32.totalorder %s16, 3
      %p211 = pnand %p209, %p210
      %p212 = pneg %p211
      // Predicated region
      $region29: #{tpu_custom_call.1} parent=5 // pred_check
        _
      $region30: #{tpu_custom_call.1} parent=5 // pred_check_branch
        %214 = sbr.rel (%p211) target = $region32
      $region31: #{tpu_custom_call.1} parent=5 // pred_region
        %s215 = ssub.s32 %s16, 1
        %s216 = sand.u32 %s50, 1
        %s217 = scalar_lea.sflag [#allocation4], %s216
        %s218 = sand.u32 %s50, 1
        %s219 = smul.addr %s218, 32
        %s220 = scalar_lea.vmem [#allocation3], %s219
        // Predicated region
        $region33: #{tpu_custom_call.1} parent=31 // pred_check
          %p221 = pneg %p63
        $region34: #{tpu_custom_call.1} parent=31 // pred_check_branch
          %223 = sbr.rel (%p221) target = $region36
        $region35: #{tpu_custom_call.1} parent=31 // pred_region
          %224 = dma.done %s217, 512
        $region36: #{tpu_custom_call.1} parent=31 // pred_fallthru
          _
        // Predicated region
        $region37: #{tpu_custom_call.1} parent=31 // pred_check
          %p225 = pneg %p91
        $region38: #{tpu_custom_call.1} parent=31 // pred_check_branch
          %227 = sbr.rel (%p225) target = $region40
        $region39: #{tpu_custom_call.1} parent=31 // pred_region
          %228 = dma.done [#allocation7], 1024
        $region40: #{tpu_custom_call.1} parent=31 // pred_fallthru
          _
        %s229 = sand.u32 %s50, 1
        %s230 = scalar_lea.sflag [#allocation4], %s229
        %s231 = sand.u32 %s50, 1
        %s232 = smul.addr %s231, 32
        %s233 = scalar_lea.vmem [#allocation3], %s232
        %p234 = pneg %p63
        %p235 = pneg %p60
        %p236 = pneg %p91
        %p237 = pneg %p88
        %p238 = scmp.lt.s32.totalorder %s27, 0
        %s239 = scalar_select %p238, %s27, 0
        %s240 = scalar_lea.vmem %s2, %s239
        %p241 = pneg %p117
        %p242 = pneg %p114
        %p243 = pneg %p145
        %p244 = pneg %p142
        %s245 = sand.u32 %s132, 1
        %s246 = scalar_lea.sflag [#allocation5], %s245
        %s247 = sand.u32 %s132, 1
        %s248 = smul.addr %s247, 32
        %s249 = scalar_lea.vmem [#allocation8], %s248
        %s250 = smul.u32 8, %s26
        %s251 = smul.u32 16, %s28
        %p252 = scmp.lt.s32.totalorder %s27, 0
        %s253 = scalar_select %p252, %s27, 0
        %s254 = scalar_lea.vmem %s2, %s253
        %s255 = smul.u32 8, %s26
        %p257 = scmp.eq.s32.totalorder %s28, 0
        // Predicated region
        $region41: #{tpu_custom_call.1} parent=31 // pred_check
          %p258 = pneg %p257
        $region42: #{tpu_custom_call.1} parent=31 // pred_check_branch
          %260 = sbr.rel (%p258) target = $region44
        $region43: #{tpu_custom_call.1} parent=31 // pred_region
          %261 = vst [vmem:[#allocation2] sm:$0xff] 0.0
          %262 = vst [vmem:[#allocation2 + $0x8] sm:$0xff] 0.0
          %263 = vst [vmem:[#allocation2 + $0x10] sm:$0xff] 0.0
          %264 = vst [vmem:[#allocation2 + $0x18] sm:$0xff] 0.0
          %265 = vst [vmem:[#allocation2 + $0x20] sm:$0xff] 0.0
          %266 = vst [vmem:[#allocation2 + $0x28] sm:$0xff] 0.0
          %267 = vst [vmem:[#allocation2 + $0x30] sm:$0xff] 0.0
          %268 = vst [vmem:[#allocation2 + $0x38] sm:$0xff] 0.0
        $region44: #{tpu_custom_call.1} parent=31 // pred_fallthru
          _
        %v269 = vld [vmem:[#allocation2] sm:$0xff]
        %v270 = vld [vmem:[#allocation2 + $0x8] sm:$0xff]
        %v271 = vld [vmem:[#allocation2 + $0x10] sm:$0xff]
        %v272 = vld [vmem:[#allocation2 + $0x18] sm:$0xff]
        %v273 = vld [vmem:[#allocation2 + $0x20] sm:$0xff]
        %v274 = vld [vmem:[#allocation2 + $0x28] sm:$0xff]
        %v275 = vld [vmem:[#allocation2 + $0x30] sm:$0xff]
        %v276 = vld [vmem:[#allocation2 + $0x38] sm:$0xff]
        %v277 = vld [vmem:[%s220] sm:$0xf]
        %v278 = vld [vmem:[%s220 + $0x4] sm:$0xf]
        %v279 = vld [vmem:[%s220 + $0x8] sm:$0xf]
        %v280 = vld [vmem:[%s220 + $0xc] sm:$0xf]
        %v281 = vld [vmem:[%s220 + $0x10] sm:$0xf]
        %v282 = vld [vmem:[%s220 + $0x14] sm:$0xf]
        %v283 = vld [vmem:[%s220 + $0x18] sm:$0xf]
        %v284 = vld [vmem:[%s220 + $0x1c] sm:$0xf]
        %v285 = vld [vmem:[#allocation6] sm:$0xf]
        %v286 = vld [vmem:[#allocation6 + $0x4] sm:$0xf]
        %v287 = vld [vmem:[#allocation6 + $0x8] sm:$0xf]
        %v288 = vld [vmem:[#allocation6 + $0xc] sm:$0xf]
        %v289 = vld [vmem:[#allocation6 + $0x10] sm:$0xf]
        %v290 = vld [vmem:[#allocation6 + $0x14] sm:$0xf]
        %v291 = vld [vmem:[#allocation6 + $0x18] sm:$0xf]
        %v292 = vld [vmem:[#allocation6 + $0x1c] sm:$0xf]
        %v293 = vld [vmem:[#allocation6 + $0x20] sm:$0xf]
        %v294 = vld [vmem:[#allocation6 + $0x24] sm:$0xf]
        %v295 = vld [vmem:[#allocation6 + $0x28] sm:$0xf]
        %v296 = vld [vmem:[#allocation6 + $0x2c] sm:$0xf]
        %v297 = vld [vmem:[#allocation6 + $0x30] sm:$0xf]
        %v298 = vld [vmem:[#allocation6 + $0x34] sm:$0xf]
        %v299 = vld [vmem:[#allocation6 + $0x38] sm:$0xf]
        %v300 = vld [vmem:[#allocation6 + $0x3c] sm:$0xf]
        %v309 = vunpack.c.l.b16 %v277
        %v310 = vunpack.c.l.b16 %v278
        %v311 = vunpack.c.l.b16 %v279
        %v312 = vunpack.c.l.b16 %v280
        %v313 = vunpack.c.l.b16 %v281
        %v314 = vunpack.c.l.b16 %v282
        %v315 = vunpack.c.l.b16 %v283
        %v316 = vunpack.c.l.b16 %v284
        %v317 = vpack.c.b16 %v310, %v309
        %v318 = vpack.c.b16 %v312, %v311
        %v319 = vpack.c.b16 %v314, %v313
        %v320 = vpack.c.b16 %v316, %v315
        %v341 = vunpack.c.l.b16 %v285
        %v342 = vunpack.c.l.b16 %v286
        %v343 = vunpack.c.l.b16 %v287
        %v344 = vunpack.c.l.b16 %v288
        %v345 = vunpack.c.l.b16 %v289
        %v346 = vunpack.c.l.b16 %v290
        %v347 = vunpack.c.l.b16 %v291
        %v348 = vunpack.c.l.b16 %v292
        %v349 = vunpack.c.l.b16 %v293
        %v350 = vunpack.c.l.b16 %v294
        %v351 = vunpack.c.l.b16 %v295
        %v352 = vunpack.c.l.b16 %v296
        %v353 = vunpack.c.l.b16 %v297
        %v354 = vunpack.c.l.b16 %v298
        %v355 = vunpack.c.l.b16 %v299
        %v356 = vunpack.c.l.b16 %v300
        %v357 = vpack.c.b16 %v342, %v341
        %v358 = vpack.c.b16 %v344, %v343
        %v359 = vpack.c.b16 %v346, %v345
        %v360 = vpack.c.b16 %v348, %v347
        %v361 = vpack.c.b16 %v350, %v349
        %v362 = vpack.c.b16 %v352, %v351
        %v363 = vpack.c.b16 %v354, %v353
        %v364 = vpack.c.b16 %v356, %v355
        %373 = vmatprep.subr.bf16.mxu0 0
        %374 = vmatpush1.bf16.msra.mxu0 %v357
        %375 = vmatprep.subr.bf16.mxu0 0
        %376 = vmatpush1.bf16.msra.mxu0 %v358
        %377 = vmatprep.subr.bf16.mxu0 0
        %378 = vmatpush1.bf16.msra.mxu0 %v359
        %379 = vmatprep.subr.bf16.mxu0 0
        %380 = vmatpush1.bf16.msra.mxu0 %v360
        %381 = vmatprep.subr.bf16.mxu0 0
        %382 = vmatpush1.bf16.msra.mxu0 %v361
        %383 = vmatprep.subr.bf16.mxu0 0
        %384 = vmatpush1.bf16.msra.mxu0 %v362
        %385 = vmatprep.subr.bf16.mxu0 0
        %386 = vmatpush1.bf16.msra.mxu0 %v363
        %387 = vmatprep.subr.bf16.mxu0 0
        %388 = vmatpush1.bf16.msra.mxu0 %v364
        %389 = vmatprep.subr.bf16.mxu0 0
        %390 = vmatpush1.bf16.msra.mxu0 0
        %391 = vmatprep.subr.bf16.mxu0 0
        %392 = vmatpush1.bf16.msra.mxu0 0
        %393 = vmatprep.subr.bf16.mxu0 0
        %394 = vmatpush1.bf16.msra.mxu0 0
        %395 = vmatprep.subr.bf16.mxu0 0
        %396 = vmatpush1.bf16.msra.mxu0 0
        %397 = vmatprep.subr.bf16.mxu0 0
        %398 = vmatpush1.bf16.msra.mxu0 0
        %399 = vmatprep.subr.bf16.mxu0 0
        %400 = vmatpush1.bf16.msra.mxu0 0
        %401 = vmatprep.subr.bf16.mxu0 0
        %402 = vmatpush1.bf16.msra.mxu0 0
        %403 = vmatprep.subr.bf16.mxu0 0
        %404 = vmatpush1.bf16.msra.mxu0 0
        %405 = vmatprep.mubr.bf16.mxu0 0
        %406 = vmatmul.mubr.bf16.gmra.mrb[0].mxu0 %v317
        %v407 = vpop.f32.mrb[0].mxu0
        %v408 = vadd.f32 0.0, %v407
        %v409 = vpop.f32.mrb[0].mxu0
        %v410 = vpop.f32.mrb[0].mxu0
        %v411 = vadd.f32 0.0, %v410
        %v412 = vpop.f32.mrb[0].mxu0
        %413 = vmatprep.mubr.bf16.mxu0 0
        %414 = vmatmul.mubr.bf16.gmra.mrb[0].mxu0 %v318
        %v415 = vpop.f32.mrb[0].mxu0
        %v416 = vadd.f32 0.0, %v415
        %v417 = vpop.f32.mrb[0].mxu0
        %v418 = vpop.f32.mrb[0].mxu0
        %v419 = vadd.f32 0.0, %v418
        %v420 = vpop.f32.mrb[0].mxu0
        %421 = vmatprep.mubr.bf16.mxu0 0
        %422 = vmatmul.mubr.bf16.gmra.mrb[0].mxu0 %v319
        %v423 = vpop.f32.mrb[0].mxu0
        %v424 = vadd.f32 0.0, %v423
        %v425 = vpop.f32.mrb[0].mxu0
        %v426 = vpop.f32.mrb[0].mxu0
        %v427 = vadd.f32 0.0, %v426
        %v428 = vpop.f32.mrb[0].mxu0
        %429 = vmatprep.mubr.bf16.mxu0 0
        %430 = vmatmul.mubr.bf16.gmra.mrb[0].mxu0 %v320
        %v431 = vpop.f32.mrb[0].mxu0
        %v432 = vadd.f32 0.0, %v431
        %v433 = vpop.f32.mrb[0].mxu0
        %v434 = vpop.f32.mrb[0].mxu0
        %v435 = vadd.f32 0.0, %v434
        %v436 = vpop.f32.mrb[0].mxu0
        %437 = vdwg.mxu0
        %v438 = vadd.f32 %v269, %v408
        %v439 = vadd.f32 %v270, %v411
        %v440 = vadd.f32 %v271, %v416
        %v441 = vadd.f32 %v272, %v419
        %v442 = vadd.f32 %v273, %v424
        %v443 = vadd.f32 %v274, %v427
        %v444 = vadd.f32 %v275, %v432
        %v445 = vadd.f32 %v276, %v435
        %446 = vst [vmem:[#allocation2] sm:$0xff] %v438
        %447 = vst [vmem:[#allocation2 + $0x8] sm:$0xff] %v439
        %448 = vst [vmem:[#allocation2 + $0x10] sm:$0xff] %v440
        %449 = vst [vmem:[#allocation2 + $0x18] sm:$0xff] %v441
        %450 = vst [vmem:[#allocation2 + $0x20] sm:$0xff] %v442
        %451 = vst [vmem:[#allocation2 + $0x28] sm:$0xff] %v443
        %452 = vst [vmem:[#allocation2 + $0x30] sm:$0xff] %v444
        %453 = vst [vmem:[#allocation2 + $0x38] sm:$0xff] %v445
        // Predicated region
        $region45: #{tpu_custom_call.1} parent=31 // pred_check
          %p454 = pneg %p257
        $region46: #{tpu_custom_call.1} parent=31 // pred_check_branch
          %456 = sbr.rel (%p454) target = $region48
        $region47: #{tpu_custom_call.1} parent=31 // pred_region
          %v457 = vld [vmem:[#allocation2] sm:$0xff]
          %v458 = vld [vmem:[#allocation2 + $0x8] sm:$0xff]
          %v459 = vld [vmem:[#allocation2 + $0x10] sm:$0xff]
          %v460 = vld [vmem:[#allocation2 + $0x18] sm:$0xff]
          %v461 = vld [vmem:[#allocation2 + $0x20] sm:$0xff]
          %v462 = vld [vmem:[#allocation2 + $0x28] sm:$0xff]
          %v463 = vld [vmem:[#allocation2 + $0x30] sm:$0xff]
          %v464 = vld [vmem:[#allocation2 + $0x38] sm:$0xff]
          %v465 = vld [vmem:[%s254] sm:$0x1]
          %v467 = vlaneseq
          %v468 = vshrl.u32 %v467, 7
          %v469 = vsub.s32 0, %v468
          %v470 = vrot.slane %v465, %v469
          %v472 = vadd.f32 %v457, %v470
          %v473 = vadd.f32 %v458, %v470
          %v474 = vadd.f32 %v459, %v470
          %v475 = vadd.f32 %v460, %v470
          %v476 = vadd.f32 %v461, %v470
          %v477 = vadd.f32 %v462, %v470
          %v478 = vadd.f32 %v463, %v470
          %v479 = vadd.f32 %v464, %v470
          %v480 = vpack.c.bf16 %v473, %v472
          %v481 = vpack.c.bf16 %v475, %v474
          %v482 = vpack.c.bf16 %v477, %v476
          %v483 = vpack.c.bf16 %v479, %v478
          %v488 = vunpack.c.l.b16 %v480
          %v489 = vunpack.c.h.b16 %v480
          %v490 = vunpack.c.l.b16 %v481
          %v491 = vunpack.c.h.b16 %v481
          %v492 = vunpack.c.l.b16 %v482
          %v493 = vunpack.c.h.b16 %v482
          %v494 = vunpack.c.l.b16 %v483
          %v495 = vunpack.c.h.b16 %v483
          %v496 = vpack.c.b16 %v488, %v488
          %v497 = vpack.c.b16 %v489, %v489
          %v498 = vpack.c.b16 %v490, %v490
          %v499 = vpack.c.b16 %v491, %v491
          %v500 = vpack.c.b16 %v492, %v492
          %v501 = vpack.c.b16 %v493, %v493
          %v502 = vpack.c.b16 %v494, %v494
          %v503 = vpack.c.b16 %v495, %v495
          %512 = vst [vmem:[%s249] sm:$0xf] %v496
          %513 = vst [vmem:[%s249 + $0x4] sm:$0xf] %v497
          %514 = vst [vmem:[%s249 + $0x8] sm:$0xf] %v498
          %515 = vst [vmem:[%s249 + $0xc] sm:$0xf] %v499
          %516 = vst [vmem:[%s249 + $0x10] sm:$0xf] %v500
          %517 = vst [vmem:[%s249 + $0x14] sm:$0xf] %v501
          %518 = vst [vmem:[%s249 + $0x18] sm:$0xf] %v502
          %519 = vst [vmem:[%s249 + $0x1c] sm:$0xf] %v503
        $region48: #{tpu_custom_call.1} parent=31 // pred_fallthru
          _
        %s520 = sand.u32 %s132, 1
        %s521 = scalar_lea.sflag [#allocation5], %s520
        %s522 = sand.u32 %s132, 1
        %s523 = smul.addr %s522, 32
        %s524 = scalar_lea.vmem [#allocation8], %s523
        // Predicated region
        $region49: #{tpu_custom_call.1} parent=31 // pred_check
          %p525 = pneg %p142
        $region50: #{tpu_custom_call.1} parent=31 // pred_check_branch
          %527 = sbr.rel (%p525) target = $region52
        $region51: #{tpu_custom_call.1} parent=31 // pred_region
          %s528 = smul.u32 8, %s26
          %s530 = ssub.s32 512, 512
          %531 = vsyncadd %s521, %s530
          %s532 = sadd.s32 %s27, %s528
          %s533 = smul.addr %s532, 64
          %s534 = scalar_lea.hbm %s3, %s533
          %s535 = sshll.u32 %s524, 4
          %s536 = int_to_ptr.vmem [resolvable:$true] %s535
          %541 = dma.vmem_to_hbm [thread:$0]  %s536, 512, %s534, %s521, 64, 64, 4
        $region52: #{tpu_custom_call.1} parent=31 // pred_fallthru
          _
      $region32: #{tpu_custom_call.1} parent=5 // pred_fallthru
        _
      %p542 = scmp.le.s32.totalorder 2, %s16
      // Predicated region
      $region53: #{tpu_custom_call.1} parent=5 // pred_check
        %p543 = pneg %p542
      $region54: #{tpu_custom_call.1} parent=5 // pred_check_branch
        %545 = sbr.rel (%p543) target = $region56
      $region55: #{tpu_custom_call.1} parent=5 // pred_region
        %s546 = ssub.s32 %s16, 2
        // Predicated region
        $region57: #{tpu_custom_call.1} parent=55 // pred_check
          %p547 = pneg %p148
        $region58: #{tpu_custom_call.1} parent=55 // pred_check_branch
          %549 = sbr.rel (%p547) target = $region60
        $region59: #{tpu_custom_call.1} parent=55 // pred_region
          %s550 = sand.u32 %s133, 1
          %s551 = scalar_lea.sflag [#allocation5], %s550
          %s552 = sand.u32 %s133, 1
          %s553 = smul.addr %s552, 32
          %s554 = scalar_lea.vmem [#allocation8], %s553
          %555 = dma.done %s551, 512
        $region60: #{tpu_custom_call.1} parent=55 // pred_fallthru
          _
      $region56: #{tpu_custom_call.1} parent=5 // pred_fallthru
        _
    $region6: #{tpu_custom_call.1} parent=1 // loop_footer
      %s20 = sadd.s32 1, %s16
    $region7: #{tpu_custom_call.1} parent=1 // loop_footer_branch
      %15 = sbr.rel target = $region3
    $region8: #{tpu_custom_call.1} parent=1 // loop_exit
      _
    %556 = vsyncpa [#allocation4], 1
    %s557 = scalar_lea.sflag [#allocation4], 1
    %558 = vsyncpa %s557, 1
    %559 = vsyncpa [#allocation7], 1
    %560 = vsyncpa [#allocation5], 1
    %s561 = scalar_lea.sflag [#allocation5], 1
    %562 = vsyncpa %s561, 1

</llo_original>
